<compile_context>
chip_gen: v6e
topology: v6e:2x2x1
jax: 0.10.0
libtpu: 0.0.40
codegen_flags: <defaults>
</compile_context>

<pallas_src>
import jax
import jax.numpy as jnp
from jax.experimental import pallas as pl
from jax.experimental.pallas import tpu as pltpu

_LANE = 128       # lane width
_TM_MAX = 2048    # max sublane-rows per grid step
                  # per-step footprint: 2*(2*tm*128*4) in + 2*(tm*128*4) out
                  # = tm*3072 B; double-buffered = tm*6144 B = 12 MiB @ 2048.


def _reduce_pair_kernel(h_ref, c_ref, ho_ref, co_ref):
    # h_ref/c_ref: (2, TM, 128) VMEM tiles; ho_ref/co_ref: (TM, 128).
    # Explicit size-2 reduction as a VPU add; lane/sublane-dense stores.
    ho_ref[...] = h_ref[0] + h_ref[1]
    co_ref[...] = c_ref[0] + c_ref[1]


def _choose_tiling(m):
    """Pick (tm, grid_steps) for m rows of 128 lanes."""
    if m < 16:
        # Tiny: one full-extent block (block == full array dims is allowed).
        return m, 1
    # Guarantee >= 2 grid steps so input prefetch overlaps output writeback,
    # and both v7x TensorCores get work on the "parallel" axis.
    tm = min(_TM_MAX, max(8, (m // 2) // 8 * 8))
    return tm, pl.cdiv(m, tm)


def reduce_state(h, c, *, min_pallas_elements=1 << 15):
    """h, c: (2, batch, hidden) -> (1, batch, hidden) each (summed over dim 0)."""
    assert h.shape == c.shape and h.shape[0] == 2
    _, batch, hidden = h.shape
    dtype = h.dtype
    n_per = batch * hidden

    # Small-size bypass: at LSTM-state sizes this op is pure launch overhead;
    # XLA fuses the size-2 reduction for free.
    if n_per < min_pallas_elements:
        return (jnp.sum(h, axis=0, keepdims=True),
                jnp.sum(c, axis=0, keepdims=True))

    h2 = h.reshape(2, n_per)
    c2 = c.reshape(2, n_per)

    rem = (-n_per) % _LANE
    if rem:
        # Ragged fallback only: zero-pad lanes (harmless for a sum).
        h2 = jnp.pad(h2, ((0, 0), (0, rem)))
        c2 = jnp.pad(c2, ((0, 0), (0, rem)))
    n_pad = n_per + rem
    m = n_pad // _LANE

    h3 = h2.reshape(2, m, _LANE)   # lane-dense, free reshape when rem == 0
    c3 = c2.reshape(2, m, _LANE)

    tm, steps = _choose_tiling(m)

    ho, co = pl.pallas_call(
        _reduce_pair_kernel,
        out_shape=(jax.ShapeDtypeStruct((m, _LANE), dtype),
                   jax.ShapeDtypeStruct((m, _LANE), dtype)),
        grid_spec=pltpu.PrefetchScalarGridSpec(
            num_scalar_prefetch=0,
            grid=(steps,),
            in_specs=[pl.BlockSpec((2, tm, _LANE), lambda i: (0, i, 0)),
                      pl.BlockSpec((2, tm, _LANE), lambda i: (0, i, 0))],
            out_specs=(pl.BlockSpec((tm, _LANE), lambda i: (i, 0)),
                       pl.BlockSpec((tm, _LANE), lambda i: (i, 0))),
        ),
        compiler_params=pltpu.CompilerParams(
            # Independent per-block work: shards across the 2 TCs on v7x;
            # harmless on v5e/v6e.
            dimension_semantics=("parallel",),
        ),
    )(h3, c3)

    if rem:
        h_flat = ho.reshape(n_pad)[:n_per]
        c_flat = co.reshape(n_pad)[:n_per]
    else:
        h_flat = ho.reshape(n_per)
        c_flat = co.reshape(n_per)
    return (h_flat.reshape(1, batch, hidden),
            c_flat.reshape(1, batch, hidden))


if __name__ == "__main__":
    # ReduceState has no parameters; build deterministic inputs.
    key = jax.random.PRNGKey(0)
    k_h, k_c = jax.random.split(key)
    batch, hidden_units = 2, 32
    h = jax.random.normal(k_h, (2, batch, hidden_units), dtype=jnp.float32)
    c = jax.random.normal(k_c, (2, batch, hidden_units), dtype=jnp.float32)

    # Force the Pallas path even at demo size (the default small-size bypass
    # would otherwise hand this to XLA).
    h_red, c_red = reduce_state(h, c, min_pallas_elements=0)
    jax.block_until_ready((h_red, c_red))

    # Reference (torch.sum(dim=0, keepdim=True)).
    h_ref = jnp.sum(h, axis=0, keepdims=True)
    c_ref = jnp.sum(c, axis=0, keepdims=True)
    assert h_red.shape == (1, batch, hidden_units)
    assert c_red.shape == (1, batch, hidden_units)
    assert jnp.allclose(h_red, h_ref, atol=1e-6)
    assert jnp.allclose(c_red, c_ref, atol=1e-6)

    # Also check the default (small-size bypass) path.
    h_b, c_b = reduce_state(h, c)
    assert jnp.allclose(h_b, h_ref, atol=1e-6)
    assert jnp.allclose(c_b, c_ref, atol=1e-6)

    print("KERNEL_OK")
</pallas_src>

<mosaic_0001>
module attributes {stable_mosaic.version = 11 : i64} {
  func.func @_reduce_pair_kernel(%arg0: i32, %arg1: memref<2x1x128xf32, #tpu.memory_space<vmem>>, %arg2: memref<2x1x128xf32, #tpu.memory_space<vmem>>, %arg3: memref<1x128xf32, #tpu.memory_space<vmem>>, %arg4: memref<1x128xf32, #tpu.memory_space<vmem>>) attributes {dimension_semantics = [#tpu.dimension_semantics<parallel>], iteration_bounds = array<i64: 1>, scalar_prefetch = 0 : i64, scratch_operands = 0 : i64, tpu.core_type = #tpu.core_type<tc>, window_params = [{transform_indices = @transform_0, window_bounds = array<i64: 2, 1, 128>}, {transform_indices = @transform_1, window_bounds = array<i64: 2, 1, 128>}, {transform_indices = @transform_2, window_bounds = array<i64: 1, 128>}, {transform_indices = @transform_3, window_bounds = array<i64: 1, 128>}]} {
    %c0 = arith.constant 0 : index
    %c0_0 = arith.constant 0 : index
    %c0_1 = arith.constant 0 : index
    %0 = vector.load %arg1[%c0, %c0_0, %c0_1] : memref<2x1x128xf32, #tpu.memory_space<vmem>>, vector<1x1x128xf32>
    %1 = vector.shape_cast %0 : vector<1x1x128xf32> to vector<1x128xf32>
    %c1 = arith.constant 1 : index
    %c0_2 = arith.constant 0 : index
    %c0_3 = arith.constant 0 : index
    %2 = vector.load %arg1[%c1, %c0_2, %c0_3] : memref<2x1x128xf32, #tpu.memory_space<vmem>>, vector<1x1x128xf32>
    %3 = vector.shape_cast %2 : vector<1x1x128xf32> to vector<1x128xf32>
    %4 = arith.addf %1, %3 : vector<1x128xf32>
    %c0_4 = arith.constant 0 : index
    %c0_5 = arith.constant 0 : index
    %5 = vector.load %arg3[%c0_4, %c0_5] : memref<1x128xf32, #tpu.memory_space<vmem>>, vector<1x128xf32>
    tpu.vector_store %arg3[%c0_4, %c0_5], %4 {strides = array<i32>} : memref<1x128xf32, #tpu.memory_space<vmem>>, vector<1x128xf32>,
    %c0_6 = arith.constant 0 : index
    %c0_7 = arith.constant 0 : index
    %c0_8 = arith.constant 0 : index
    %6 = vector.load %arg2[%c0_6, %c0_7, %c0_8] : memref<2x1x128xf32, #tpu.memory_space<vmem>>, vector<1x1x128xf32>
    %7 = vector.shape_cast %6 : vector<1x1x128xf32> to vector<1x128xf32>
    %c1_9 = arith.constant 1 : index
    %c0_10 = arith.constant 0 : index
    %c0_11 = arith.constant 0 : index
    %8 = vector.load %arg2[%c1_9, %c0_10, %c0_11] : memref<2x1x128xf32, #tpu.memory_space<vmem>>, vector<1x1x128xf32>
    %9 = vector.shape_cast %8 : vector<1x1x128xf32> to vector<1x128xf32>
    %10 = arith.addf %7, %9 : vector<1x128xf32>
    %c0_12 = arith.constant 0 : index
    %c0_13 = arith.constant 0 : index
    %11 = vector.load %arg4[%c0_12, %c0_13] : memref<1x128xf32, #tpu.memory_space<vmem>>, vector<1x128xf32>
    tpu.vector_store %arg4[%c0_12, %c0_13], %10 {strides = array<i32>} : memref<1x128xf32, #tpu.memory_space<vmem>>, vector<1x128xf32>,
    return
  }
  func.func @transform_0(%arg0: i32) -> (i32, i32, i32) {
    %c0_i32 = arith.constant 0 : i32
    %c0_i32_0 = arith.constant 0 : i32
    %c0_i32_1 = arith.constant 0 : i32
    return %c0_i32, %arg0, %c0_i32_0 : i32, i32, i32
  }
  func.func @transform_1(%arg0: i32) -> (i32, i32, i32) {
    %c0_i32 = arith.constant 0 : i32
    %c0_i32_0 = arith.constant 0 : i32
    %c0_i32_1 = arith.constant 0 : i32
    return %c0_i32, %arg0, %c0_i32_0 : i32, i32, i32
  }
  func.func @transform_2(%arg0: i32) -> (i32, i32) {
    %c0_i32 = arith.constant 0 : i32
    %c0_i32_0 = arith.constant 0 : i32
    return %arg0, %c0_i32 : i32, i32
  }
  func.func @transform_3(%arg0: i32) -> (i32, i32) {
    %c0_i32 = arith.constant 0 : i32
    %c0_i32_0 = arith.constant 0 : i32
    return %arg0, %c0_i32 : i32, i32
  }
}

</mosaic_0001>

<llo_original>
// kernel: tpu_custom_call.1
$region0: #{tpu_custom_call.1}
  #allocation0 [shape = 'u32[]', space=smem, size = 0x4, offset = 0x4, fixed_abs, tag = 'smem constant byte address 0x4 - core index']
  #allocation1 [shape = 'u32[144,128]{1,0:T(1,128)}', space=vmem, size = 0x12000, scoped, tag = 'internal scratch']
  %s0 = inlined_call_operand.hbm [shape: f32[2,1,128], index: 0, kind: input, shape index: {}]
  %s1 = inlined_call_operand.hbm [shape: f32[2,1,128], index: 1, kind: input, shape index: {}]
  %s2 = inlined_call_operand.hbm [shape: f32[1,128], index: 2, kind: output, shape index: {0}]
  %s3 = inlined_call_operand.hbm [shape: f32[1,128], index: 3, kind: output, shape index: {1}]
  %4 = xla_tuple %s2, %s3
  %s5 = sld [smem:[#allocation0]]
  $region34: #{tpu_custom_call.1} parent=0
    _
  %s7 = ssub.s32 1, %s5
  %s8 = scalar_select 0, %s7, %s5
  $region1: #{tpu_custom_call.1} parent=0
    #allocation2 [shape = 'u8[1024]{0}', space=vmem, size = 0x400, scoped, tag = 'input window, operand 0, single buffered']
    #allocation3 [shape = 's32[1]{0}', space=sflag, size = 0x4, scoped, tag = 'scoped memory for tpu_custom_call.1']
    #allocation4 [shape = 's32[1]{0}', space=sflag, size = 0x4, scoped, tag = 'scoped memory for tpu_custom_call.1']
    #allocation5 [shape = 'u8[1024]{0}', space=vmem, size = 0x400, scoped, tag = 'input window, operand 1, single buffered']
    #allocation6 [shape = 's32[1]{0}', space=sflag, size = 0x4, scoped, tag = 'scoped memory for tpu_custom_call.1']
    #allocation7 [shape = 'u8[512]{0}', space=vmem, size = 0x400, scoped, tag = 'output window, operand 0, single buffered']
    #allocation8 [shape = 'u8[512]{0}', space=vmem, size = 0x400, scoped, tag = 'output window, operand 1, single buffered']
    #allocation9 [shape = 's32[1]{0}', space=sflag, size = 0x4, scoped, tag = 'scoped memory for tpu_custom_call.1']
    %9 = vsyncpa [#allocation3], 0
    %10 = vsyncpa [#allocation6], 0
    %11 = vsyncpa [#allocation4], 0
    %12 = vsyncpa [#allocation9], 0
    // Predicated region
    $region2: #{tpu_custom_call.1} parent=1 // pred_check
      _
    $region3: #{tpu_custom_call.1} parent=1 // pred_check_branch
      %14 = sbr.rel (0) target = $region5
    $region4: #{tpu_custom_call.1} parent=1 // pred_region
      %s16 = ssub.s32 32, 32
      %17 = vsyncadd [#allocation3], %s16
      %s18 = sshll.u32 [#allocation2], 4
      %s19 = int_to_ptr.vmem [resolvable:$true] %s18
      %24 = dma.hbm_to_vmem [thread:$0]  %s0, 32, %s19, [#allocation3], 16, 16, 1
    $region5: #{tpu_custom_call.1} parent=1 // pred_fallthru
      _
    // Predicated region
    $region6: #{tpu_custom_call.1} parent=1 // pred_check
      _
    $region7: #{tpu_custom_call.1} parent=1 // pred_check_branch
      %26 = sbr.rel (0) target = $region9
    $region8: #{tpu_custom_call.1} parent=1 // pred_region
      %s28 = ssub.s32 32, 32
      %29 = vsyncadd [#allocation6], %s28
      %s30 = sshll.u32 [#allocation5], 4
      %s31 = int_to_ptr.vmem [resolvable:$true] %s30
      %36 = dma.hbm_to_vmem [thread:$0]  %s1, 32, %s31, [#allocation6], 16, 16, 1
    $region9: #{tpu_custom_call.1} parent=1 // pred_fallthru
      _
    // Predicated region
    $region10: #{tpu_custom_call.1} parent=1 // pred_check
      _
    $region11: #{tpu_custom_call.1} parent=1 // pred_check_branch
      %38 = sbr.rel (0) target = $region13
    $region12: #{tpu_custom_call.1} parent=1 // pred_region
      %39 = dma.done [#allocation3], 32
    $region13: #{tpu_custom_call.1} parent=1 // pred_fallthru
      _
    // Predicated region
    $region14: #{tpu_custom_call.1} parent=1 // pred_check
      _
    $region15: #{tpu_custom_call.1} parent=1 // pred_check_branch
      %41 = sbr.rel (0) target = $region17
    $region16: #{tpu_custom_call.1} parent=1 // pred_region
      %42 = dma.done [#allocation6], 32
    $region17: #{tpu_custom_call.1} parent=1 // pred_fallthru
      _
    %v43 = vld [vmem:[#allocation2] sm:$0x1]
    %s44 = scalar_lea.vmem [#allocation2], 1
    %v45 = vld [vmem:[%s44] sm:$0x1]
    %v46 = vadd.f32 %v43, %v45
    %47 = vst [vmem:[#allocation7] sm:$0x1] %v46
    %v48 = vld [vmem:[#allocation5] sm:$0x1]
    %s49 = scalar_lea.vmem [#allocation5], 1
    %v50 = vld [vmem:[%s49] sm:$0x1]
    %v51 = vadd.f32 %v48, %v50
    %52 = vst [vmem:[#allocation8] sm:$0x1] %v51
    // Predicated region
    $region18: #{tpu_custom_call.1} parent=1 // pred_check
      _
    $region19: #{tpu_custom_call.1} parent=1 // pred_check_branch
      %54 = sbr.rel (0) target = $region21
    $region20: #{tpu_custom_call.1} parent=1 // pred_region
      %s56 = ssub.s32 16, 16
      %57 = vsyncadd [#allocation4], %s56
      %s59 = sshll.u32 [#allocation7], 4
      %s60 = int_to_ptr.vmem [resolvable:$true] %s59
      %62 = dma.vmem_to_hbm [thread:$0]  %s60, 16, %s2, [#allocation4]
    $region21: #{tpu_custom_call.1} parent=1 // pred_fallthru
      _
    // Predicated region
    $region22: #{tpu_custom_call.1} parent=1 // pred_check
      _
    $region23: #{tpu_custom_call.1} parent=1 // pred_check_branch
      %64 = sbr.rel (0) target = $region25
    $region24: #{tpu_custom_call.1} parent=1 // pred_region
      %s66 = ssub.s32 16, 16
      %67 = vsyncadd [#allocation9], %s66
      %s69 = sshll.u32 [#allocation8], 4
      %s70 = int_to_ptr.vmem [resolvable:$true] %s69
      %72 = dma.vmem_to_hbm [thread:$0]  %s70, 16, %s3, [#allocation9]
    $region25: #{tpu_custom_call.1} parent=1 // pred_fallthru
      _
    // Predicated region
    $region26: #{tpu_custom_call.1} parent=1 // pred_check
      _
    $region27: #{tpu_custom_call.1} parent=1 // pred_check_branch
      %74 = sbr.rel (0) target = $region29
    $region28: #{tpu_custom_call.1} parent=1 // pred_region
      %75 = dma.done [#allocation4], 16
    $region29: #{tpu_custom_call.1} parent=1 // pred_fallthru
      _
    // Predicated region
    $region30: #{tpu_custom_call.1} parent=1 // pred_check
      _
    $region31: #{tpu_custom_call.1} parent=1 // pred_check_branch
      %77 = sbr.rel (0) target = $region33
    $region32: #{tpu_custom_call.1} parent=1 // pred_region
      %78 = dma.done [#allocation9], 16
    $region33: #{tpu_custom_call.1} parent=1 // pred_fallthru
      _
    %79 = vsyncpa [#allocation3], 1
    %80 = vsyncpa [#allocation6], 1
    %81 = vsyncpa [#allocation4], 1
    %82 = vsyncpa [#allocation9], 1

</llo_original>
